<compile_context>
chip_gen: v5e
topology: v5e:2x2
jax: 0.10.0
libtpu: 0.0.40
codegen_flags: <defaults>
</compile_context>

<pallas_src>
import functools

import jax
import jax.numpy as jnp
from jax.experimental import pallas as pl
from jax.experimental.pallas import tpu as pltpu


_BOXES_PER_ROW = 128      # boxes packed along the lane axis per lane-dense row
_MAX_TILE_ROWS = 1024     # 1024 rows x 640 lanes x 4B = 2.5 MiB per f32 buffer


def _round_up(x: int, m: int) -> int:
    return ((x + m - 1) // m) * m


def _bbox_loss_kernel(pred_ref, target_ref, sq_ref, l1_ref, *,
                      rows, tile_rows, inner, needs_mask):
    """Accumulate per-lane column sums of d^2 and |d| into resident blocks."""
    i = pl.program_id(1)          # inner reduction axis ("arbitrary")

    @pl.when(i == 0)
    def _init():
        sq_ref[...] = jnp.zeros_like(sq_ref)
        l1_ref[...] = jnp.zeros_like(l1_ref)

    d = pred_ref[...].astype(jnp.float32) - target_ref[...].astype(jnp.float32)

    if needs_mask:
        # The trailing block hangs past the true row count; those VMEM rows
        # hold garbage (not zeros), so zero the diff before it is used.
        base = (pl.program_id(0) * inner + i) * tile_rows
        row_id = base + jax.lax.broadcasted_iota(jnp.int32, d.shape, 0)
        d = jnp.where(row_id < rows, d, 0.0)

    # Unmasked per-lane column sums; coord/conf lane selection is deferred to
    # the epilogue, so there are no per-step selects or scalar sum-trees.
    sq_ref[...] += jnp.sum(d * d, axis=0, keepdims=True)
    l1_ref[...] += jnp.sum(jnp.abs(d), axis=0, keepdims=True)


@jax.jit
def bbox_loss(pred: jax.Array, target: jax.Array) -> jax.Array:
    """Pallas implementation of BBoxLoss.forward. pred/target: (N, C), C >= 4."""
    assert pred.shape == target.shape and pred.ndim == 2 and pred.shape[1] >= 4
    n, c = pred.shape
    lanes = c * _BOXES_PER_ROW

    # Minimal, conditional padding: only to the next multiple of 128 boxes so
    # the lane-dense reshape below stays a free contiguous view.  Padded boxes
    # are zero in BOTH inputs -> diff == 0 -> no bias; divisors use true N.
    # TODO(synk): for N % 128 != 0 this still materializes one padded copy of
    # each input; removing it entirely would require giving up the lane-dense
    # layout (5/128 lane occupancy => ~25x more VALU work per element).
    pad_boxes = (-n) % _BOXES_PER_ROW
    if pad_boxes:
        pred = jnp.pad(pred, ((0, pad_boxes), (0, 0)))
        target = jnp.pad(target, ((0, pad_boxes), (0, 0)))
    rows = (n + pad_boxes) // _BOXES_PER_ROW
    p = pred.reshape(rows, lanes)     # free when pad_boxes == 0
    t = target.reshape(rows, lanes)

    # Sublane granularity depends on dtype packing (f32: 8, bf16: 16, 8-bit: 32).
    sub = max(8, 32 // jnp.dtype(pred.dtype).itemsize)

    # Adaptive tiling: exactly enough uniform blocks to cover `rows`, split
    # across a leading "parallel" axis for megacore parts.
    num_splits = 2 if rows >= 64 else 1
    min_blocks = pl.cdiv(rows, _MAX_TILE_ROWS)
    total_blocks = num_splits * pl.cdiv(max(min_blocks, 1), num_splits)
    inner = total_blocks // num_splits
    tile_rows = min(_round_up(pl.cdiv(rows, total_blocks), sub), rows)
    needs_mask = total_blocks * tile_rows != rows

    # Belt-and-braces: never let an index map point at a fully out-of-bounds
    # block (the in-kernel mask already zeroes such a block's contribution).
    last_block = pl.cdiv(rows, tile_rows) - 1
    if total_blocks - 1 > last_block:
        def in_map(s, i):
            return (jnp.minimum(s * inner + i, last_block), 0)
    else:
        def in_map(s, i):
            return (s * inner + i, 0)

    kernel = functools.partial(_bbox_loss_kernel, rows=rows,
                               tile_rows=tile_rows, inner=inner,
                               needs_mask=needs_mask)
    acc_shape = jax.ShapeDtypeStruct((num_splits * 8, lanes), jnp.float32)
    sq_part, l1_part = pl.pallas_call(
        kernel,
        out_shape=(acc_shape, acc_shape),
        grid_spec=pltpu.PrefetchScalarGridSpec(
            num_scalar_prefetch=0,
            grid=(num_splits, inner),
            in_specs=[
                pl.BlockSpec((tile_rows, lanes), in_map),
                pl.BlockSpec((tile_rows, lanes), in_map),
            ],
            out_specs=[
                pl.BlockSpec((8, lanes), lambda s, i: (s, 0)),
                pl.BlockSpec((8, lanes), lambda s, i: (s, 0)),
            ],
        ),
        compiler_params=pltpu.CompilerParams(
            dimension_semantics=("parallel", "arbitrary"),
            vmem_limit_bytes=32 * 1024 * 1024,
        ),
    )(p, t)

    # Epilogue on (lanes,) vectors: coord/conf lane selection, true-N divisors
    # and the 0.1 weights (channel of a lane-dense element is lane % C).
    sq_cols = sq_part.reshape(num_splits, 8, lanes)[:, 0, :].sum(axis=0)
    l1_cols = l1_part.reshape(num_splits, 8, lanes)[:, 0, :].sum(axis=0)
    ch = jnp.arange(lanes, dtype=jnp.int32) % c
    is_coord = ch < 4
    coord_sq = jnp.sum(jnp.where(is_coord, sq_cols, 0.0))
    coord_l1 = jnp.sum(jnp.where(is_coord, l1_cols, 0.0))
    n4 = jnp.float32(4 * n)
    loss = coord_sq / n4 + 0.1 * (coord_l1 / n4)
    if c > 4:  # statically skip the conf term when there is no 5th channel
        conf_sq = jnp.sum(jnp.where(ch == 4, sq_cols, 0.0))
        loss = loss + 0.1 * (conf_sq / jnp.float32(n))
    return loss


def _bbox_loss_ref(pred, target):
    # Pure-JAX reference mirroring the PyTorch module.
    p = pred.astype(jnp.float32)
    t = target.astype(jnp.float32)
    coord = jnp.mean((p[:, :4] - t[:, :4]) ** 2)
    l1 = jnp.mean(jnp.abs(p[:, :4] - t[:, :4]))
    loss = coord + 0.1 * l1
    if p.shape[1] > 4:
        loss = loss + 0.1 * jnp.mean((p[:, 4] - t[:, 4]) ** 2)
    return loss


if __name__ == "__main__":
    key = jax.random.PRNGKey(0)
    # Primary small case, plus cases exercising: no-conf (C=4), the
    # unaligned-N / ragged-trailing-tile mask path, the 2-way parallel split,
    # and a multi-step inner reduction grid.
    cases = [(8, 5), (1000, 4), (70000, 5), (300000, 5)]
    for idx, (n, c) in enumerate(cases):
        k1, k2 = jax.random.split(jax.random.fold_in(key, idx))
        pred = jax.random.uniform(k1, (n, c), dtype=jnp.float32)
        target = jax.random.uniform(k2, (n, c), dtype=jnp.float32)

        loss = bbox_loss(pred, target)
        jax.block_until_ready(loss)

        ref = _bbox_loss_ref(pred, target)
        assert jnp.allclose(loss, ref, rtol=1e-4, atol=1e-6), (n, c, loss, ref)
    print("KERNEL_OK")
</pallas_src>

<mosaic_0001>
module attributes {stable_mosaic.version = 11 : i64} {
  func.func @_bbox_loss_kernel(%arg0: i32, %arg1: i32, %arg2: memref<1x640xf32, #tpu.memory_space<vmem>>, %arg3: memref<1x640xf32, #tpu.memory_space<vmem>>, %arg4: memref<8x640xf32, #tpu.memory_space<vmem>>, %arg5: memref<8x640xf32, #tpu.memory_space<vmem>>) attributes {dimension_semantics = [#tpu.dimension_semantics<parallel>, #tpu.dimension_semantics<arbitrary>], iteration_bounds = array<i64: 1, 1>, scalar_prefetch = 0 : i64, scratch_operands = 0 : i64, tpu.core_type = #tpu.core_type<tc>, window_params = [{transform_indices = @transform_0, window_bounds = array<i64: 1, 640>}, {transform_indices = @transform_1, window_bounds = array<i64: 1, 640>}, {transform_indices = @transform_2, window_bounds = array<i64: 8, 640>}, {transform_indices = @transform_3, window_bounds = array<i64: 8, 640>}]} {
    %c0_i32 = arith.constant 0 : i32
    %0 = arith.cmpi eq, %arg1, %c0_i32 : i32
    %1 = arith.extui %0 : i1 to i32
    %c0_i32_0 = arith.constant 0 : i32
    %2 = arith.cmpi ne, %1, %c0_i32_0 : i32
    scf.if %2 {
      %cst_13 = arith.constant 0.000000e+00 : f32
      %20 = vector.broadcast %cst_13 : f32 to vector<8x640xf32>
      %c0_14 = arith.constant 0 : index
      %c0_15 = arith.constant 0 : index
      %21 = vector.load %arg4[%c0_14, %c0_15] : memref<8x640xf32, #tpu.memory_space<vmem>>, vector<8x640xf32>
      tpu.vector_store %arg4[%c0_14, %c0_15], %20 {strides = array<i32>} : memref<8x640xf32, #tpu.memory_space<vmem>>, vector<8x640xf32>,
      %cst_16 = arith.constant 0.000000e+00 : f32
      %22 = vector.broadcast %cst_16 : f32 to vector<8x640xf32>
      %c0_17 = arith.constant 0 : index
      %c0_18 = arith.constant 0 : index
      %23 = vector.load %arg5[%c0_17, %c0_18] : memref<8x640xf32, #tpu.memory_space<vmem>>, vector<8x640xf32>
      tpu.vector_store %arg5[%c0_17, %c0_18], %22 {strides = array<i32>} : memref<8x640xf32, #tpu.memory_space<vmem>>, vector<8x640xf32>,
    } else {
    }
    %c0 = arith.constant 0 : index
    %c0_1 = arith.constant 0 : index
    %3 = vector.load %arg2[%c0, %c0_1] : memref<1x640xf32, #tpu.memory_space<vmem>>, vector<1x640xf32>
    %c0_2 = arith.constant 0 : index
    %c0_3 = arith.constant 0 : index
    %4 = vector.load %arg3[%c0_2, %c0_3] : memref<1x640xf32, #tpu.memory_space<vmem>>, vector<1x640xf32>
    %5 = arith.subf %3, %4 : vector<1x640xf32>
    %c0_4 = arith.constant 0 : index
    %c0_5 = arith.constant 0 : index
    %6 = vector.load %arg4[%c0_4, %c0_5] : memref<8x640xf32, #tpu.memory_space<vmem>>, vector<8x640xf32>
    %7 = arith.mulf %5, %5 : vector<1x640xf32>
    %cst = arith.constant dense<0.000000e+00> : vector<640xf32>
    %8 = vector.multi_reduction <add>, %7, %cst [0] : vector<1x640xf32> to vector<640xf32>
    %9 = vector.shape_cast %8 : vector<640xf32> to vector<1x640xf32>
    %10 = vector.broadcast %9 : vector<1x640xf32> to vector<8x640xf32>
    %11 = arith.addf %6, %10 : vector<8x640xf32>
    %c0_6 = arith.constant 0 : index
    %c0_7 = arith.constant 0 : index
    %12 = vector.load %arg4[%c0_6, %c0_7] : memref<8x640xf32, #tpu.memory_space<vmem>>, vector<8x640xf32>
    tpu.vector_store %arg4[%c0_6, %c0_7], %11 {strides = array<i32>} : memref<8x640xf32, #tpu.memory_space<vmem>>, vector<8x640xf32>,
    %c0_8 = arith.constant 0 : index
    %c0_9 = arith.constant 0 : index
    %13 = vector.load %arg5[%c0_8, %c0_9] : memref<8x640xf32, #tpu.memory_space<vmem>>, vector<8x640xf32>
    %14 = math.absf %5 : vector<1x640xf32>
    %cst_10 = arith.constant dense<0.000000e+00> : vector<640xf32>
    %15 = vector.multi_reduction <add>, %14, %cst_10 [0] : vector<1x640xf32> to vector<640xf32>
    %16 = vector.shape_cast %15 : vector<640xf32> to vector<1x640xf32>
    %17 = vector.broadcast %16 : vector<1x640xf32> to vector<8x640xf32>
    %18 = arith.addf %13, %17 : vector<8x640xf32>
    %c0_11 = arith.constant 0 : index
    %c0_12 = arith.constant 0 : index
    %19 = vector.load %arg5[%c0_11, %c0_12] : memref<8x640xf32, #tpu.memory_space<vmem>>, vector<8x640xf32>
    tpu.vector_store %arg5[%c0_11, %c0_12], %18 {strides = array<i32>} : memref<8x640xf32, #tpu.memory_space<vmem>>, vector<8x640xf32>,
    return
  }
  func.func @transform_0(%arg0: i32, %arg1: i32) -> (i32, i32) {
    %c1_i32 = arith.constant 1 : i32
    %0 = arith.muli %arg0, %c1_i32 : i32
    %1 = arith.addi %0, %arg1 : i32
    %c0_i32 = arith.constant 0 : i32
    %c0_i32_0 = arith.constant 0 : i32
    return %1, %c0_i32 : i32, i32
  }
  func.func @transform_1(%arg0: i32, %arg1: i32) -> (i32, i32) {
    %c1_i32 = arith.constant 1 : i32
    %0 = arith.muli %arg0, %c1_i32 : i32
    %1 = arith.addi %0, %arg1 : i32
    %c0_i32 = arith.constant 0 : i32
    %c0_i32_0 = arith.constant 0 : i32
    return %1, %c0_i32 : i32, i32
  }
  func.func @transform_2(%arg0: i32, %arg1: i32) -> (i32, i32) {
    %c0_i32 = arith.constant 0 : i32
    %c0_i32_0 = arith.constant 0 : i32
    return %arg0, %c0_i32 : i32, i32
  }
  func.func @transform_3(%arg0: i32, %arg1: i32) -> (i32, i32) {
    %c0_i32 = arith.constant 0 : i32
    %c0_i32_0 = arith.constant 0 : i32
    return %arg0, %c0_i32 : i32, i32
  }
}

</mosaic_0001>

<llo_original>
// kernel: bbox_loss.1
$region0: #{bbox_loss.1}
  #allocation0 [shape = 'u32[]', space=smem, size = 0x4, offset = 0x4, fixed_abs, tag = 'smem constant byte address 0x4 - core index']
  #allocation1 [shape = 'u32[72,128]{1,0:T(1,128)}', space=vmem, size = 0x9000, scoped, tag = 'internal scratch']
  %s0 = inlined_call_operand.vmem [shape: f32[1,640], index: 0, kind: input, shape index: {}]
  %s1 = inlined_call_operand.vmem [shape: f32[1,640], index: 1, kind: input, shape index: {}]
  %s2 = inlined_call_operand.vmem [shape: f32[8,640], index: 2, kind: output, shape index: {0}]
  %s3 = inlined_call_operand.vmem [shape: f32[8,640], index: 3, kind: output, shape index: {1}]
  %4 = xla_tuple %s2, %s3
  %s5 = sld [smem:[#allocation0]]
  $region30: #{bbox_loss.1} parent=0
    _
  %s7 = ssub.s32 1, %s5
  %s8 = scalar_select 0, %s7, %s5
  // Predicated region
  $region2: #{bbox_loss.1} parent=0 // pred_check
    _
  $region3: #{bbox_loss.1} parent=0 // pred_check_branch
    %10 = sbr.rel (0) target = $region5
  $region4: #{bbox_loss.1} parent=0 // pred_region
    %s11 = sadd.s32 0, 0
    %p12 = scmp.lt.s32.totalorder %s11, 0
    %s13 = scalar_select %p12, %s11, 0
    %s14 = smul.addr %s13, 5
    %s15 = scalar_lea.vmem %s0, %s14
    %s16 = sadd.s32 0, 0
  $region5: #{bbox_loss.1} parent=0 // pred_fallthru
    _
  // Predicated region
  $region6: #{bbox_loss.1} parent=0 // pred_check
    _
  $region7: #{bbox_loss.1} parent=0 // pred_check_branch
    %18 = sbr.rel (0) target = $region9
  $region8: #{bbox_loss.1} parent=0 // pred_region
    %s19 = sadd.s32 0, 0
    %p20 = scmp.lt.s32.totalorder %s19, 0
    %s21 = scalar_select %p20, %s19, 0
    %s22 = smul.addr %s21, 5
    %s23 = scalar_lea.vmem %s1, %s22
    %s24 = sadd.s32 0, 0
  $region9: #{bbox_loss.1} parent=0 // pred_fallthru
    _
  %s25 = sadd.s32 0, 0
  %p26 = scmp.lt.s32.totalorder %s25, 0
  %s27 = scalar_select %p26, %s25, 0
  %s28 = smul.addr %s27, 5
  %s29 = scalar_lea.vmem %s0, %s28
  %s30 = sadd.s32 0, 0
  %p31 = scmp.lt.s32.totalorder %s30, 0
  %s32 = scalar_select %p31, %s30, 0
  %s33 = smul.addr %s32, 5
  %s34 = scalar_lea.vmem %s1, %s33
  %s35 = sadd.s32 0, 0
  %p36 = scmp.lt.s32.totalorder %s35, 0
  %s37 = scalar_select %p36, %s35, 0
  %s38 = smul.addr %s37, 5
  %s39 = scalar_lea.vmem %s0, %s38
  %s40 = sadd.s32 0, 0
  %s41 = sadd.s32 0, 0
  %p42 = scmp.lt.s32.totalorder %s41, 0
  %s43 = scalar_select %p42, %s41, 0
  %s44 = smul.addr %s43, 5
  %s45 = scalar_lea.vmem %s1, %s44
  %s46 = sadd.s32 0, 0
  %p47 = scmp.eq.s32.totalorder 0, 0
  // Predicated region
  $region10: #{bbox_loss.1} parent=0 // pred_check
    %p48 = pneg %p47
  $region11: #{bbox_loss.1} parent=0 // pred_check_branch
    %50 = sbr.rel (%p48) target = $region13
  $region12: #{bbox_loss.1} parent=0 // pred_region
    %51 = vst [vmem:[%s2] sm:$0xff] 0.0
    %52 = vst [vmem:[%s2 + $0x8] sm:$0xff] 0.0
    %53 = vst [vmem:[%s2 + $0x10] sm:$0xff] 0.0
    %54 = vst [vmem:[%s2 + $0x18] sm:$0xff] 0.0
    %55 = vst [vmem:[%s2 + $0x20] sm:$0xff] 0.0
    %56 = vst [vmem:[%s3] sm:$0xff] 0.0
    %57 = vst [vmem:[%s3 + $0x8] sm:$0xff] 0.0
    %58 = vst [vmem:[%s3 + $0x10] sm:$0xff] 0.0
    %59 = vst [vmem:[%s3 + $0x18] sm:$0xff] 0.0
    %60 = vst [vmem:[%s3 + $0x20] sm:$0xff] 0.0
  $region13: #{bbox_loss.1} parent=0 // pred_fallthru
    _
  %v61 = vld [vmem:[%s39] sm:$0x1f]
  %v62 = vld [vmem:[%s45] sm:$0x1f]
  %v63 = vsub.f32 %v61, %v62
  %v64 = vld [vmem:[%s2] sm:$0xff]
  %v65 = vld [vmem:[%s2 + $0x8] sm:$0xff]
  %v66 = vld [vmem:[%s2 + $0x10] sm:$0xff]
  %v67 = vld [vmem:[%s2 + $0x18] sm:$0xff]
  %v68 = vld [vmem:[%s2 + $0x20] sm:$0xff]
  %v69 = vmul.f32 %v63, %v63
  %v70 = vadd.f32 %v69, 0.0
  %v72 = vperm.slane %v70, 0
  %v73 = vperm.slane %v70, 1
  %v74 = vperm.slane %v70, 2
  %v75 = vperm.slane %v70, 3
  %v76 = vperm.slane %v70, 4
  %v82 = vadd.f32 %v64, %v72
  %v83 = vadd.f32 %v65, %v73
  %v84 = vadd.f32 %v66, %v74
  %v85 = vadd.f32 %v67, %v75
  %v86 = vadd.f32 %v68, %v76
  %87 = vst [vmem:[%s2] sm:$0xff] %v82
  %88 = vst [vmem:[%s2 + $0x8] sm:$0xff] %v83
  %89 = vst [vmem:[%s2 + $0x10] sm:$0xff] %v84
  %90 = vst [vmem:[%s2 + $0x18] sm:$0xff] %v85
  %91 = vst [vmem:[%s2 + $0x20] sm:$0xff] %v86
  %v92 = vld [vmem:[%s3] sm:$0xff]
  %v93 = vld [vmem:[%s3 + $0x8] sm:$0xff]
  %v94 = vld [vmem:[%s3 + $0x10] sm:$0xff]
  %v95 = vld [vmem:[%s3 + $0x18] sm:$0xff]
  %v96 = vld [vmem:[%s3 + $0x20] sm:$0xff]
  %v97 = vand.u32 2147483647, %v63
  %v98 = vadd.f32 %v97, 0.0
  %v100 = vperm.slane %v98, 0
  %v101 = vperm.slane %v98, 1
  %v102 = vperm.slane %v98, 2
  %v103 = vperm.slane %v98, 3
  %v104 = vperm.slane %v98, 4
  %v110 = vadd.f32 %v92, %v100
  %v111 = vadd.f32 %v93, %v101
  %v112 = vadd.f32 %v94, %v102
  %v113 = vadd.f32 %v95, %v103
  %v114 = vadd.f32 %v96, %v104
  %115 = vst [vmem:[%s3] sm:$0xff] %v110
  %116 = vst [vmem:[%s3 + $0x8] sm:$0xff] %v111
  %117 = vst [vmem:[%s3 + $0x10] sm:$0xff] %v112
  %118 = vst [vmem:[%s3 + $0x18] sm:$0xff] %v113
  %119 = vst [vmem:[%s3 + $0x20] sm:$0xff] %v114
  // Predicated region
  $region14: #{bbox_loss.1} parent=0 // pred_check
    _
  $region15: #{bbox_loss.1} parent=0 // pred_check_branch
    %121 = sbr.rel (0) target = $region17
  $region16: #{bbox_loss.1} parent=0 // pred_region
    _
  $region17: #{bbox_loss.1} parent=0 // pred_fallthru
    _
  // Predicated region
  $region18: #{bbox_loss.1} parent=0 // pred_check
    _
  $region19: #{bbox_loss.1} parent=0 // pred_check_branch
    %123 = sbr.rel (0) target = $region21
  $region20: #{bbox_loss.1} parent=0 // pred_region
    _
  $region21: #{bbox_loss.1} parent=0 // pred_fallthru
    _
  // Predicated region
  $region22: #{bbox_loss.1} parent=0 // pred_check
    _
  $region23: #{bbox_loss.1} parent=0 // pred_check_branch
    %125 = sbr.rel (0) target = $region25
  $region24: #{bbox_loss.1} parent=0 // pred_region
    _
  $region25: #{bbox_loss.1} parent=0 // pred_fallthru
    _
  // Predicated region
  $region26: #{bbox_loss.1} parent=0 // pred_check
    _
  $region27: #{bbox_loss.1} parent=0 // pred_check_branch
    %127 = sbr.rel (0) target = $region29
  $region28: #{bbox_loss.1} parent=0 // pred_region
    _
  $region29: #{bbox_loss.1} parent=0 // pred_fallthru
    _

</llo_original>
